<compile_context>
chip_gen: v5e
topology: v5e:2x2
jax: 0.10.0
libtpu: 0.0.40
codegen_flags: <defaults>
</compile_context>

<pallas_src>
import functools

import jax
import jax.numpy as jnp
from jax.experimental import pallas as pl
from jax.experimental.pallas import tpu as pltpu

TEMP_STD = 0.953750876436425
TEMP_AVG = 38.06273148148148
RR_STD = 2.80196220146655
RR_AVG = 21.239583333333332


def mlp_kernel(x_ref, w1_ref, b1_ref, w2_ref, b2_ref, w3_ref, b3_ref, o_ref, *, chunk):
    # Tiny weights/biases: load once per grid step, hoisted out of the chunk loop.
    w1 = w1_ref[...]
    b1 = b1_ref[...]
    w2 = w2_ref[...]
    b2 = b2_ref[...]
    w3 = w3_ref[...]
    b3 = b3_ref[...]

    n_chunks = x_ref.shape[0] // chunk

    def body(c, carry):
        r = pl.multiple_of(c * chunk, chunk)
        x = x_ref[pl.ds(r, chunk), :]

        # Layer 1: linear + ReLU (normalization already folded into w1/b1).
        h = jnp.dot(x, w1, preferred_element_type=jnp.float32) + b1
        h = jnp.maximum(h, 0.0)
        # TODO(synk): dropout(p=0.1) is identity at inference; intentionally skipped.

        # Layer 2: linear + ReLU.
        h = jnp.dot(h, w2, preferred_element_type=jnp.float32) + b2
        h = jnp.maximum(h, 0.0)

        # Layer 3: linear + ReLU (ReLU on the logits is in the PyTorch model).
        h = jnp.dot(h, w3, preferred_element_type=jnp.float32) + b3
        h = jnp.maximum(h, 0.0)

        # Softmax over the class axis — exact division (accuracy is free here).
        m = jnp.max(h, axis=1, keepdims=True)
        e = jnp.exp(h - m)
        p = e / jnp.sum(e, axis=1, keepdims=True)

        o_ref[pl.ds(r, chunk), :] = p.astype(o_ref.dtype)
        return carry

    jax.lax.fori_loop(0, n_chunks, body, 0, unroll=True)


def _round_up(n, m):
    return ((n + m - 1) // m) * m


def mlp_forward(x, w1, b1, w2, b2, w3, b3,
                temp_std=TEMP_STD, temp_avg=TEMP_AVG,
                rr_std=RR_STD, rr_avg=RR_AVG,
                tile_b=4096):
    B, F = x.shape
    num_output = w3.shape[1]

    # Fold the per-column affine normalization (cols 0/1) into W1/b1 (trace time):
    #   x' = x*s + t  =>  x' @ W1 + b1 = x @ (s[:,None]*W1) + (t @ W1 + b1)
    s = jnp.ones((F,), jnp.float32).at[0].set(1.0 / temp_std).at[1].set(1.0 / rr_std)
    t = (jnp.zeros((1, F), jnp.float32)
         .at[0, 0].set(-temp_avg / temp_std)
         .at[0, 1].set(-rr_avg / rr_std))
    w1f = s[:, None] * w1
    b1f = b1 + t @ w1

    # Tile selection:
    #  - aim for >=2 grid steps (v7x megacore gets both TCs busy),
    #  - cap at tile_b=4096 rows (~8-9 MiB of double-buffered lane-padded blocks,
    #    safe on v7x's smaller VMEM and plenty for v5e/v6e),
    #  - make it a multiple of the in-kernel sub-chunk so the loop divides evenly.
    CHUNK = 256
    tile = max(8, min(tile_b, _round_up(pl.cdiv(B, 2), 8)))
    if tile >= CHUNK:
        tile = _round_up(tile, CHUNK)
        chunk = CHUNK
    else:
        chunk = tile

    # Ragged last block is handled by Pallas: out-of-bounds rows are never
    # written back (the map is row-wise, so no cross-row pollution).
    grid = (pl.cdiv(B, tile),)

    out = pl.pallas_call(
        functools.partial(mlp_kernel, chunk=chunk),
        out_shape=jax.ShapeDtypeStruct((B, num_output), jnp.float32),
        grid=grid,
        in_specs=[
            pl.BlockSpec((tile, F), lambda i: (i, 0)),      # x row tile (streamed)
            pl.BlockSpec(w1f.shape, lambda i: (0, 0)),      # w1 (VMEM-resident)
            pl.BlockSpec(b1f.shape, lambda i: (0, 0)),      # b1
            pl.BlockSpec(w2.shape, lambda i: (0, 0)),       # w2
            pl.BlockSpec(b2.shape, lambda i: (0, 0)),       # b2
            pl.BlockSpec(w3.shape, lambda i: (0, 0)),       # w3
            pl.BlockSpec(b3.shape, lambda i: (0, 0)),       # b3
        ],
        out_specs=pl.BlockSpec((tile, num_output), lambda i: (i, 0)),
        compiler_params=pltpu.CompilerParams(
            dimension_semantics=("parallel",),
        ),
    )(x, w1f, b1f, w2, b2, w3, b3)
    return out


def init_params(key, num_input, num_hidden_1, num_hidden_2, num_output):
    """PyTorch-style uniform init; weights stored (in_features, out_features)."""
    ks = jax.random.split(key, 6)

    def linear(kw, kb, fan_in, fan_out):
        bound = 1.0 / jnp.sqrt(fan_in)
        w = jax.random.uniform(kw, (fan_in, fan_out), jnp.float32, -bound, bound)
        b = jax.random.uniform(kb, (1, fan_out), jnp.float32, -bound, bound)
        return w, b

    w1, b1 = linear(ks[0], ks[1], num_input, num_hidden_1)
    w2, b2 = linear(ks[2], ks[3], num_hidden_1, num_hidden_2)
    w3, b3 = linear(ks[4], ks[5], num_hidden_2, num_output)
    return w1, b1, w2, b2, w3, b3


def reference_forward(x, w1, b1, w2, b2, w3, b3):
    """Pure-JAX reference matching the PyTorch forward (inference mode)."""
    hp = jax.lax.Precision.HIGHEST
    x = x.at[:, 0].set((x[:, 0] - TEMP_AVG) / TEMP_STD)
    x = x.at[:, 1].set((x[:, 1] - RR_AVG) / RR_STD)
    h = jnp.maximum(jnp.dot(x, w1, precision=hp) + b1, 0.0)
    h = jnp.maximum(jnp.dot(h, w2, precision=hp) + b2, 0.0)
    h = jnp.maximum(jnp.dot(h, w3, precision=hp) + b3, 0.0)
    return jax.nn.softmax(h, axis=1)


if __name__ == "__main__":
    num_input, num_hidden_1, num_hidden_2, num_output = 8, 32, 16, 4
    batch = 20  # not a multiple of the tile -> exercises the ragged last block

    key = jax.random.PRNGKey(0)
    kx, kp = jax.random.split(key)
    # Features roughly at the scale of vitals so the normalization is meaningful.
    x = jax.random.uniform(kx, (batch, num_input), jnp.float32, 0.0, 50.0)

    params = init_params(kp, num_input, num_hidden_1, num_hidden_2, num_output)

    out = jax.block_until_ready(mlp_forward(x, *params))
    ref = reference_forward(x, *params)

    assert out.shape == (batch, num_output)
    assert bool(jnp.allclose(out, ref, atol=1e-3, rtol=1e-3)), "mismatch vs reference"
    # With exact division in the softmax epilogue, rows sum to 1.
    assert bool(jnp.allclose(jnp.sum(out, axis=1), 1.0, atol=1e-5)), "rows must sum to 1"

    print("KERNEL_OK")
</pallas_src>

<mosaic_0001>
module attributes {stable_mosaic.version = 11 : i64} {
  func.func @mlp_kernel(%arg0: i32, %arg1: memref<16x8xf32, #tpu.memory_space<vmem>>, %arg2: memref<8x32xf32, #tpu.memory_space<vmem>>, %arg3: memref<1x32xf32, #tpu.memory_space<vmem>>, %arg4: memref<32x16xf32, #tpu.memory_space<vmem>>, %arg5: memref<1x16xf32, #tpu.memory_space<vmem>>, %arg6: memref<16x4xf32, #tpu.memory_space<vmem>>, %arg7: memref<1x4xf32, #tpu.memory_space<vmem>>, %arg8: memref<16x4xf32, #tpu.memory_space<vmem>>) attributes {dimension_semantics = [#tpu.dimension_semantics<parallel>], iteration_bounds = array<i64: 2>, scalar_prefetch = 0 : i64, scratch_operands = 0 : i64, tpu.core_type = #tpu.core_type<tc>, window_params = [{transform_indices = @transform_0, window_bounds = array<i64: 16, 8>}, {pipeline_mode = #tpu.pipeline_mode<synchronous>, transform_indices = @transform_1, window_bounds = array<i64: 8, 32>}, {pipeline_mode = #tpu.pipeline_mode<synchronous>, transform_indices = @transform_2, window_bounds = array<i64: 1, 32>}, {pipeline_mode = #tpu.pipeline_mode<synchronous>, transform_indices = @transform_3, window_bounds = array<i64: 32, 16>}, {pipeline_mode = #tpu.pipeline_mode<synchronous>, transform_indices = @transform_4, window_bounds = array<i64: 1, 16>}, {pipeline_mode = #tpu.pipeline_mode<synchronous>, transform_indices = @transform_5, window_bounds = array<i64: 16, 4>}, {pipeline_mode = #tpu.pipeline_mode<synchronous>, transform_indices = @transform_6, window_bounds = array<i64: 1, 4>}, {transform_indices = @transform_7, window_bounds = array<i64: 16, 4>}]} {
    %c0 = arith.constant 0 : index
    %c0_0 = arith.constant 0 : index
    %0 = vector.load %arg2[%c0, %c0_0] : memref<8x32xf32, #tpu.memory_space<vmem>>, vector<8x32xf32>
    %c0_1 = arith.constant 0 : index
    %c0_2 = arith.constant 0 : index
    %1 = vector.load %arg3[%c0_1, %c0_2] : memref<1x32xf32, #tpu.memory_space<vmem>>, vector<1x32xf32>
    %c0_3 = arith.constant 0 : index
    %c0_4 = arith.constant 0 : index
    %2 = vector.load %arg4[%c0_3, %c0_4] : memref<32x16xf32, #tpu.memory_space<vmem>>, vector<32x16xf32>
    %c0_5 = arith.constant 0 : index
    %c0_6 = arith.constant 0 : index
    %3 = vector.load %arg5[%c0_5, %c0_6] : memref<1x16xf32, #tpu.memory_space<vmem>>, vector<1x16xf32>
    %c0_7 = arith.constant 0 : index
    %c0_8 = arith.constant 0 : index
    %4 = vector.load %arg6[%c0_7, %c0_8] : memref<16x4xf32, #tpu.memory_space<vmem>>, vector<16x4xf32>
    %c0_9 = arith.constant 0 : index
    %c0_10 = arith.constant 0 : index
    %5 = vector.load %arg7[%c0_9, %c0_10] : memref<1x4xf32, #tpu.memory_space<vmem>>, vector<1x4xf32>
    %c0_i32 = arith.constant 0 : i32
    %c16_i32 = arith.constant 16 : i32
    %6 = arith.muli %c0_i32, %c16_i32 : i32
    %7 = tpu.assume_multiple %6, 16 : i32
    %8 = arith.index_cast %7 : i32 to index
    %c0_11 = arith.constant 0 : index
    %9 = vector.load %arg1[%8, %c0_11] : memref<16x8xf32, #tpu.memory_space<vmem>>, vector<16x8xf32>
    %cst = arith.constant dense<0.000000e+00> : vector<16x32xf32>
    %10 = tpu.matmul %9, %0, %cst {dimension_numbers = #tpu.dot_dimension_numbers<[1], [0], [0], [1], [0, 0, 1, 1], [], []>} : vector<16x8xf32>, vector<8x32xf32>, vector<16x32xf32> -> vector<16x32xf32>
    %11 = vector.broadcast %1 : vector<1x32xf32> to vector<16x32xf32>
    %12 = arith.addf %10, %11 : vector<16x32xf32>
    %cst_12 = arith.constant 0.000000e+00 : f32
    %13 = vector.broadcast %cst_12 : f32 to vector<16x32xf32>
    %14 = arith.maximumf %12, %13 : vector<16x32xf32>
    %cst_13 = arith.constant dense<0.000000e+00> : vector<16x16xf32>
    %15 = tpu.matmul %14, %2, %cst_13 {dimension_numbers = #tpu.dot_dimension_numbers<[1], [0], [0], [1], [0, 0, 1, 1], [], []>} : vector<16x32xf32>, vector<32x16xf32>, vector<16x16xf32> -> vector<16x16xf32>
    %16 = vector.broadcast %3 : vector<1x16xf32> to vector<16x16xf32>
    %17 = arith.addf %15, %16 : vector<16x16xf32>
    %cst_14 = arith.constant 0.000000e+00 : f32
    %18 = vector.broadcast %cst_14 : f32 to vector<16x16xf32>
    %19 = arith.maximumf %17, %18 : vector<16x16xf32>
    %cst_15 = arith.constant dense<0.000000e+00> : vector<16x4xf32>
    %20 = tpu.matmul %19, %4, %cst_15 {dimension_numbers = #tpu.dot_dimension_numbers<[1], [0], [0], [1], [0, 0, 1, 1], [], []>} : vector<16x16xf32>, vector<16x4xf32>, vector<16x4xf32> -> vector<16x4xf32>
    %21 = vector.broadcast %5 : vector<1x4xf32> to vector<16x4xf32>
    %22 = arith.addf %20, %21 : vector<16x4xf32>
    %cst_16 = arith.constant 0.000000e+00 : f32
    %23 = vector.broadcast %cst_16 : f32 to vector<16x4xf32>
    %24 = arith.maximumf %22, %23 : vector<16x4xf32>
    %cst_17 = arith.constant dense<0xFF800000> : vector<16xf32>
    %25 = vector.multi_reduction <maximumf>, %24, %cst_17 [1] : vector<16x4xf32> to vector<16xf32>
    %26 = vector.shape_cast %25 : vector<16xf32> to vector<16x1xf32>
    %27 = vector.broadcast %26 : vector<16x1xf32> to vector<16x4xf32>
    %28 = arith.subf %24, %27 : vector<16x4xf32>
    %29 = math.exp %28 : vector<16x4xf32>
    %cst_18 = arith.constant dense<0.000000e+00> : vector<16xf32>
    %30 = vector.multi_reduction <add>, %29, %cst_18 [1] : vector<16x4xf32> to vector<16xf32>
    %31 = vector.shape_cast %30 : vector<16xf32> to vector<16x1xf32>
    %32 = vector.broadcast %31 : vector<16x1xf32> to vector<16x4xf32>
    %33 = arith.divf %29, %32 : vector<16x4xf32>
    %34 = arith.index_cast %7 : i32 to index
    %c0_19 = arith.constant 0 : index
    %35 = vector.load %arg8[%34, %c0_19] : memref<16x4xf32, #tpu.memory_space<vmem>>, vector<16x4xf32>
    tpu.vector_store %arg8[%34, %c0_19], %33 {strides = array<i32>} : memref<16x4xf32, #tpu.memory_space<vmem>>, vector<16x4xf32>,
    %c1_i32 = arith.constant 1 : i32
    return
  }
  func.func @transform_0(%arg0: i32) -> (i32, i32) {
    %c0_i32 = arith.constant 0 : i32
    %c0_i32_0 = arith.constant 0 : i32
    return %arg0, %c0_i32 : i32, i32
  }
  func.func @transform_1(%arg0: i32) -> (i32, i32) {
    %c0_i32 = arith.constant 0 : i32
    %c0_i32_0 = arith.constant 0 : i32
    %c0_i32_1 = arith.constant 0 : i32
    return %c0_i32, %c0_i32_0 : i32, i32
  }
  func.func @transform_2(%arg0: i32) -> (i32, i32) {
    %c0_i32 = arith.constant 0 : i32
    %c0_i32_0 = arith.constant 0 : i32
    %c0_i32_1 = arith.constant 0 : i32
    return %c0_i32, %c0_i32_0 : i32, i32
  }
  func.func @transform_3(%arg0: i32) -> (i32, i32) {
    %c0_i32 = arith.constant 0 : i32
    %c0_i32_0 = arith.constant 0 : i32
    %c0_i32_1 = arith.constant 0 : i32
    return %c0_i32, %c0_i32_0 : i32, i32
  }
  func.func @transform_4(%arg0: i32) -> (i32, i32) {
    %c0_i32 = arith.constant 0 : i32
    %c0_i32_0 = arith.constant 0 : i32
    %c0_i32_1 = arith.constant 0 : i32
    return %c0_i32, %c0_i32_0 : i32, i32
  }
  func.func @transform_5(%arg0: i32) -> (i32, i32) {
    %c0_i32 = arith.constant 0 : i32
    %c0_i32_0 = arith.constant 0 : i32
    %c0_i32_1 = arith.constant 0 : i32
    return %c0_i32, %c0_i32_0 : i32, i32
  }
  func.func @transform_6(%arg0: i32) -> (i32, i32) {
    %c0_i32 = arith.constant 0 : i32
    %c0_i32_0 = arith.constant 0 : i32
    %c0_i32_1 = arith.constant 0 : i32
    return %c0_i32, %c0_i32_0 : i32, i32
  }
  func.func @transform_7(%arg0: i32) -> (i32, i32) {
    %c0_i32 = arith.constant 0 : i32
    %c0_i32_0 = arith.constant 0 : i32
    return %arg0, %c0_i32 : i32, i32
  }
}

</mosaic_0001>

<llo_original>
// kernel: tpu_custom_call.1
$region0: #{tpu_custom_call.1}
  #allocation0 [shape = 'u32[]', space=smem, size = 0x4, offset = 0x4, fixed_abs, tag = 'smem constant byte address 0x4 - core index']
  #allocation1 [shape = 'u32[72,128]{1,0:T(1,128)}', space=vmem, size = 0x9000, scoped, tag = 'internal scratch']
  %s0 = inlined_call_operand.vmem [shape: f32[20,8], index: 0, kind: input, shape index: {}]
  %s1 = inlined_call_operand.vmem [shape: f32[8,32], index: 1, kind: input, shape index: {}]
  %s2 = inlined_call_operand.vmem [shape: f32[1,32], index: 2, kind: input, shape index: {}]
  %s3 = inlined_call_operand.vmem [shape: f32[32,16], index: 3, kind: input, shape index: {}]
  %s4 = inlined_call_operand.vmem [shape: f32[1,16], index: 4, kind: input, shape index: {}]
  %s5 = inlined_call_operand.vmem [shape: f32[16,4], index: 5, kind: input, shape index: {}]
  %s6 = inlined_call_operand.vmem [shape: f32[1,4], index: 6, kind: input, shape index: {}]
  %s7 = inlined_call_operand.vmem [shape: f32[20,4], index: 7, kind: output, shape index: {}]
  %s8 = sld [smem:[#allocation0]]
  $region109: #{tpu_custom_call.1} parent=0
    _
  %s10 = ssub.s32 1, %s8
  %s11 = scalar_select 0, %s10, %s8
  $region1: #{tpu_custom_call.1} parent=0
    #allocation2 [shape = 'u8[16384]{0}', space=vmem, size = 0x4000, scoped, tag = 'output window, operand 0']
    loop: start=0, step=1, limit=4
    $region2: #{tpu_custom_call.1} parent=1 // loop_pre_header
      _
    $region3: #{tpu_custom_call.1} parent=1 // loop_header
      %s13 = sphi 0, %s17
      %p14 = scmp.ge.s32.totalorder %s13, 4
      %s23 = sphi 0, %s25
      %s26 = sphi 0, %s23
      %s27 = sphi 0, %s26
      %s43 = sphi 0, %s27
      %s47 = sphi 0, %s47
      %s49 = sphi 0, %s47
      %s50 = sphi 0, %s49
      %s64 = sphi 0, %s50
      %s68 = sphi 0, %s68
      %s70 = sphi 0, %s68
      %s71 = sphi 0, %s70
      %s85 = sphi 0, %s71
      %s89 = sphi 0, %s89
      %s91 = sphi 0, %s89
      %s92 = sphi 0, %s91
      %s106 = sphi 0, %s92
      %s110 = sphi 0, %s110
      %s112 = sphi 0, %s110
      %s113 = sphi 0, %s112
      %s127 = sphi 0, %s113
      %s131 = sphi 0, %s131
      %s133 = sphi 0, %s131
      %s134 = sphi 0, %s133
      %s148 = sphi 0, %s134
      %s152 = sphi 0, %s152
      %s154 = sphi 0, %s152
      %s155 = sphi 0, %s154
      %s169 = sphi 0, %s155
      %s175 = sphi 0, %s177
      %s178 = sphi 0, %s175
      %s179 = sphi 0, %s178
      %s195 = sphi 0, %s179
    $region4: #{tpu_custom_call.1} parent=1 // loop_header_branch
      %16 = sbr.rel (%p14) target = $region8
    $region5: #{tpu_custom_call.1} parent=1 // loop_body
      %s18 = ssub.s32 %s13, 1
      %s19 = ssub.s32 %s13, 2
      %s20 = sadd.s32 %s13, 1
      %s21 = ssub.s32 %s13, %s20
      %p22 = scmp.eq.s32.totalorder %s21, 0
      %s24 = sadd.s32 %s23, 1
      %s25 = scalar_select %p22, %s23, %s24
      %p28 = pneg %p22
      %p29 = scmp.eq.s32.totalorder %s13, 1
      %p30 = por %p28, %p29
      %p31 = scmp.ne.s32.totalorder %s23, %s26
      %p32 = scmp.eq.s32.totalorder %s13, 0
      %p33 = por %p31, %p32
      %p34 = scmp.ne.s32.totalorder %s23, %s26
      %p35 = scmp.eq.s32.totalorder %s18, 1
      %p36 = por %p34, %p35
      %p37 = scmp.ne.s32.totalorder %s26, %s27
      %p38 = scmp.eq.s32.totalorder %s18, 0
      %p39 = por %p37, %p38
      %p40 = scmp.ne.s32.totalorder %s26, %s27
      %p41 = scmp.eq.s32.totalorder %s19, 1
      %p42 = por %p40, %p41
      %p44 = scmp.ne.s32.totalorder %s27, %s43
      %p45 = scmp.eq.s32.totalorder %s19, 0
      %p46 = por %p44, %p45
      %s48 = sadd.s32 %s47, 1
      %p51 = scmp.eq.s32.totalorder %s13, 1
      %p52 = scmp.ne.s32.totalorder %s47, %s49
      %p53 = scmp.eq.s32.totalorder %s13, 0
      %p54 = por %p52, %p53
      %p55 = scmp.ne.s32.totalorder %s47, %s49
      %p56 = scmp.eq.s32.totalorder %s18, 1
      %p57 = por %p55, %p56
      %p58 = scmp.ne.s32.totalorder %s49, %s50
      %p59 = scmp.eq.s32.totalorder %s18, 0
      %p60 = por %p58, %p59
      %p61 = scmp.ne.s32.totalorder %s49, %s50
      %p62 = scmp.eq.s32.totalorder %s19, 1
      %p63 = por %p61, %p62
      %p65 = scmp.ne.s32.totalorder %s50, %s64
      %p66 = scmp.eq.s32.totalorder %s19, 0
      %p67 = por %p65, %p66
      %s69 = sadd.s32 %s68, 1
      %p72 = scmp.eq.s32.totalorder %s13, 1
      %p73 = scmp.ne.s32.totalorder %s68, %s70
      %p74 = scmp.eq.s32.totalorder %s13, 0
      %p75 = por %p73, %p74
      %p76 = scmp.ne.s32.totalorder %s68, %s70
      %p77 = scmp.eq.s32.totalorder %s18, 1
      %p78 = por %p76, %p77
      %p79 = scmp.ne.s32.totalorder %s70, %s71
      %p80 = scmp.eq.s32.totalorder %s18, 0
      %p81 = por %p79, %p80
      %p82 = scmp.ne.s32.totalorder %s70, %s71
      %p83 = scmp.eq.s32.totalorder %s19, 1
      %p84 = por %p82, %p83
      %p86 = scmp.ne.s32.totalorder %s71, %s85
      %p87 = scmp.eq.s32.totalorder %s19, 0
      %p88 = por %p86, %p87
      %s90 = sadd.s32 %s89, 1
      %p93 = scmp.eq.s32.totalorder %s13, 1
      %p94 = scmp.ne.s32.totalorder %s89, %s91
      %p95 = scmp.eq.s32.totalorder %s13, 0
      %p96 = por %p94, %p95
      %p97 = scmp.ne.s32.totalorder %s89, %s91
      %p98 = scmp.eq.s32.totalorder %s18, 1
      %p99 = por %p97, %p98
      %p100 = scmp.ne.s32.totalorder %s91, %s92
      %p101 = scmp.eq.s32.totalorder %s18, 0
      %p102 = por %p100, %p101
      %p103 = scmp.ne.s32.totalorder %s91, %s92
      %p104 = scmp.eq.s32.totalorder %s19, 1
      %p105 = por %p103, %p104
      %p107 = scmp.ne.s32.totalorder %s92, %s106
      %p108 = scmp.eq.s32.totalorder %s19, 0
      %p109 = por %p107, %p108
      %s111 = sadd.s32 %s110, 1
      %p114 = scmp.eq.s32.totalorder %s13, 1
      %p115 = scmp.ne.s32.totalorder %s110, %s112
      %p116 = scmp.eq.s32.totalorder %s13, 0
      %p117 = por %p115, %p116
      %p118 = scmp.ne.s32.totalorder %s110, %s112
      %p119 = scmp.eq.s32.totalorder %s18, 1
      %p120 = por %p118, %p119
      %p121 = scmp.ne.s32.totalorder %s112, %s113
      %p122 = scmp.eq.s32.totalorder %s18, 0
      %p123 = por %p121, %p122
      %p124 = scmp.ne.s32.totalorder %s112, %s113
      %p125 = scmp.eq.s32.totalorder %s19, 1
      %p126 = por %p124, %p125
      %p128 = scmp.ne.s32.totalorder %s113, %s127
      %p129 = scmp.eq.s32.totalorder %s19, 0
      %p130 = por %p128, %p129
      %s132 = sadd.s32 %s131, 1
      %p135 = scmp.eq.s32.totalorder %s13, 1
      %p136 = scmp.ne.s32.totalorder %s131, %s133
      %p137 = scmp.eq.s32.totalorder %s13, 0
      %p138 = por %p136, %p137
      %p139 = scmp.ne.s32.totalorder %s131, %s133
      %p140 = scmp.eq.s32.totalorder %s18, 1
      %p141 = por %p139, %p140
      %p142 = scmp.ne.s32.totalorder %s133, %s134
      %p143 = scmp.eq.s32.totalorder %s18, 0
      %p144 = por %p142, %p143
      %p145 = scmp.ne.s32.totalorder %s133, %s134
      %p146 = scmp.eq.s32.totalorder %s19, 1
      %p147 = por %p145, %p146
      %p149 = scmp.ne.s32.totalorder %s134, %s148
      %p150 = scmp.eq.s32.totalorder %s19, 0
      %p151 = por %p149, %p150
      %s153 = sadd.s32 %s152, 1
      %p156 = scmp.eq.s32.totalorder %s13, 1
      %p157 = scmp.ne.s32.totalorder %s152, %s154
      %p158 = scmp.eq.s32.totalorder %s13, 0
      %p159 = por %p157, %p158
      %p160 = scmp.ne.s32.totalorder %s152, %s154
      %p161 = scmp.eq.s32.totalorder %s18, 1
      %p162 = por %p160, %p161
      %p163 = scmp.ne.s32.totalorder %s154, %s155
      %p164 = scmp.eq.s32.totalorder %s18, 0
      %p165 = por %p163, %p164
      %p166 = scmp.ne.s32.totalorder %s154, %s155
      %p167 = scmp.eq.s32.totalorder %s19, 1
      %p168 = por %p166, %p167
      %p170 = scmp.ne.s32.totalorder %s155, %s169
      %p171 = scmp.eq.s32.totalorder %s19, 0
      %p172 = por %p170, %p171
      %s173 = ssub.s32 %s13, %s20
      %p174 = scmp.eq.s32.totalorder %s173, 0
      %s176 = sadd.s32 %s175, 1
      %s177 = scalar_select %p174, %s175, %s176
      %p180 = pneg %p174
      %p181 = scmp.eq.s32.totalorder %s13, 1
      %p182 = por %p180, %p181
      %p183 = scmp.ne.s32.totalorder %s175, %s178
      %p184 = scmp.eq.s32.totalorder %s13, 0
      %p185 = por %p183, %p184
      %p186 = scmp.ne.s32.totalorder %s175, %s178
      %p187 = scmp.eq.s32.totalorder %s18, 1
      %p188 = por %p186, %p187
      %p189 = scmp.ne.s32.totalorder %s178, %s179
      %p190 = scmp.eq.s32.totalorder %s18, 0
      %p191 = por %p189, %p190
      %p192 = scmp.ne.s32.totalorder %s178, %s179
      %p193 = scmp.eq.s32.totalorder %s19, 1
      %p194 = por %p192, %p193
      %p196 = scmp.ne.s32.totalorder %s179, %s195
      %p197 = scmp.eq.s32.totalorder %s19, 0
      %p198 = por %p196, %p197
      %p199 = scmp.le.s32.totalorder 1, %s13
      %p200 = scmp.lt.s32.totalorder %s13, 3
      %p201 = pnand %p199, %p200
      %p202 = pneg %p201
      // Predicated region
      $region9: #{tpu_custom_call.1} parent=5 // pred_check
        _
      $region10: #{tpu_custom_call.1} parent=5 // pred_check_branch
        %204 = sbr.rel (%p201) target = $region12
      $region11: #{tpu_custom_call.1} parent=5 // pred_region
        %s205 = ssub.s32 %s13, 1
        // Predicated region
        $region13: #{tpu_custom_call.1} parent=11 // pred_check
          %p206 = pneg %p60
        $region14: #{tpu_custom_call.1} parent=11 // pred_check_branch
          %208 = sbr.rel (%p206) target = $region16
        $region15: #{tpu_custom_call.1} parent=11 // pred_region
          _
        $region16: #{tpu_custom_call.1} parent=11 // pred_fallthru
          _
        // Predicated region
        $region17: #{tpu_custom_call.1} parent=11 // pred_check
          %p209 = pneg %p81
        $region18: #{tpu_custom_call.1} parent=11 // pred_check_branch
          %211 = sbr.rel (%p209) target = $region20
        $region19: #{tpu_custom_call.1} parent=11 // pred_region
          _
        $region20: #{tpu_custom_call.1} parent=11 // pred_fallthru
          _
        // Predicated region
        $region21: #{tpu_custom_call.1} parent=11 // pred_check
          %p212 = pneg %p102
        $region22: #{tpu_custom_call.1} parent=11 // pred_check_branch
          %214 = sbr.rel (%p212) target = $region24
        $region23: #{tpu_custom_call.1} parent=11 // pred_region
          _
        $region24: #{tpu_custom_call.1} parent=11 // pred_fallthru
          _
        // Predicated region
        $region25: #{tpu_custom_call.1} parent=11 // pred_check
          %p215 = pneg %p123
        $region26: #{tpu_custom_call.1} parent=11 // pred_check_branch
          %217 = sbr.rel (%p215) target = $region28
        $region27: #{tpu_custom_call.1} parent=11 // pred_region
          _
        $region28: #{tpu_custom_call.1} parent=11 // pred_fallthru
          _
        // Predicated region
        $region29: #{tpu_custom_call.1} parent=11 // pred_check
          %p218 = pneg %p144
        $region30: #{tpu_custom_call.1} parent=11 // pred_check_branch
          %220 = sbr.rel (%p218) target = $region32
        $region31: #{tpu_custom_call.1} parent=11 // pred_region
          _
        $region32: #{tpu_custom_call.1} parent=11 // pred_fallthru
          _
        // Predicated region
        $region33: #{tpu_custom_call.1} parent=11 // pred_check
          %p221 = pneg %p165
        $region34: #{tpu_custom_call.1} parent=11 // pred_check_branch
          %223 = sbr.rel (%p221) target = $region36
        $region35: #{tpu_custom_call.1} parent=11 // pred_region
          _
        $region36: #{tpu_custom_call.1} parent=11 // pred_fallthru
          _
      $region12: #{tpu_custom_call.1} parent=5 // pred_fallthru
        _
      %p224 = scmp.lt.s32.totalorder %s13, 2
      // Predicated region
      $region37: #{tpu_custom_call.1} parent=5 // pred_check
        %p225 = pneg %p224
      $region38: #{tpu_custom_call.1} parent=5 // pred_check_branch
        %227 = sbr.rel (%p225) target = $region40
      $region39: #{tpu_custom_call.1} parent=5 // pred_region
        // Predicated region
        $region41: #{tpu_custom_call.1} parent=39 // pred_check
          %p228 = pneg %p33
        $region42: #{tpu_custom_call.1} parent=39 // pred_check_branch
          %230 = sbr.rel (%p228) target = $region44
        $region43: #{tpu_custom_call.1} parent=39 // pred_region
          %s231 = smul.u32 2, %s13
          %s232 = ssub.s32 3, %s231
          %p233 = scmp.lt.s32.totalorder %s232, 2
          %s234 = scalar_select %p233, %s232, 2
          %s235 = smul.u32 8, %s234
          %p236 = scmp.lt.s32.totalorder %s231, 2
          %s237 = scalar_select %p236, %s231, 2
          %s238 = smul.addr %s237, 8
          %s239 = scalar_lea.vmem %s0, %s238
          %s240 = smul.u32 2, %s13
          %s241 = ssub.s32 3, %s240
          %p242 = scmp.lt.s32.totalorder %s241, 2
          %s243 = scalar_select %p242, %s241, 2
          %s244 = smul.u32 8, %s243
        $region44: #{tpu_custom_call.1} parent=39 // pred_fallthru
          _
      $region40: #{tpu_custom_call.1} parent=5 // pred_fallthru
        _
      %p245 = scmp.le.s32.totalorder 1, %s13
      %p246 = scmp.lt.s32.totalorder %s13, 3
      %p247 = pnand %p245, %p246
      %p248 = pneg %p247
      // Predicated region
      $region45: #{tpu_custom_call.1} parent=5 // pred_check
        _
      $region46: #{tpu_custom_call.1} parent=5 // pred_check_branch
        %250 = sbr.rel (%p247) target = $region48
      $region47: #{tpu_custom_call.1} parent=5 // pred_region
        %s251 = ssub.s32 %s13, 1
        %s252 = smul.u32 2, %s18
        %s253 = ssub.s32 3, %s252
        %p254 = scmp.lt.s32.totalorder %s253, 2
        %s255 = scalar_select %p254, %s253, 2
        %s256 = smul.u32 8, %s255
        %p257 = scmp.lt.s32.totalorder %s252, 2
        %s258 = scalar_select %p257, %s252, 2
        %s259 = smul.addr %s258, 8
        %s260 = scalar_lea.vmem %s0, %s259
        %p261 = pneg %p39
        %p262 = pneg %p36
        %p263 = pneg %p60
        %p264 = pneg %p57
        %p265 = pneg %p81
        %p266 = pneg %p78
        %p267 = pneg %p102
        %p268 = pneg %p99
        %p269 = pneg %p123
        %p270 = pneg %p120
        %p271 = pneg %p144
        %p272 = pneg %p141
        %p273 = pneg %p165
        %p274 = pneg %p162
        %p275 = pneg %p191
        %p276 = pneg %p188
        %s277 = sand.u32 %s178, 1
        %s278 = sand.u32 %s178, 1
        %s279 = smul.addr %s278, 16
        %s280 = scalar_lea.vmem [#allocation2], %s279
        %s281 = smul.u32 2, %s18
        %s282 = ssub.s32 3, %s281
        %p283 = scmp.lt.s32.totalorder %s282, 2
        %s284 = scalar_select %p283, %s282, 2
        %s285 = smul.u32 8, %s284
        %p286 = scmp.lt.s32.totalorder %s281, 2
        %s287 = scalar_select %p286, %s281, 2
        %s288 = smul.addr %s287, 8
        %s289 = scalar_lea.vmem %s0, %s288
        %s290 = smul.u32 2, %s18
        %s291 = ssub.s32 3, %s290
        %p292 = scmp.lt.s32.totalorder %s291, 2
        %s293 = scalar_select %p292, %s291, 2
        %s294 = smul.u32 8, %s293
        %s295 = smul.u32 2, %s18
        %s296 = ssub.s32 3, %s295
        %p297 = scmp.lt.s32.totalorder %s296, 2
        %s298 = scalar_select %p297, %s296, 2
        %s299 = smul.u32 8, %s298
        %v300 = vld [vmem:[%s1] sm:$0xff]
        %v301 = vld [vmem:[%s2] sm:$0x1]
        %v302 = vld [vmem:[%s3] sm:$0xff]
        %v303 = vld [vmem:[%s3 + $0x8] sm:$0xff]
        %v304 = vld [vmem:[%s3 + $0x10] sm:$0xff]
        %v305 = vld [vmem:[%s3 + $0x18] sm:$0xff]
        %v306 = vld [vmem:[%s4] sm:$0x1]
        %v307 = vld [vmem:[%s5] sm:$0xff]
        %v308 = vld [vmem:[%s5 + $0x8] sm:$0xff]
        %v309 = vld [vmem:[%s6] sm:$0x1]
        %v310 = vld [vmem:[%s289] sm:$0xff]
        %v311 = vld [vmem:[%s289 + $0x8] sm:$0xff]
        %v313 = vperm.slane %v301, 0
        %vm315 = vcmask 64512
        %v317 = vsel %vm315, %v310, 0
        %v320 = vsel %vm315, %v311, 0
        %322 = vmatpush.msra.mxu0 0.0
        %323 = vmatpush.msra.mxu0 0.0
        %324 = vmatpush.msra.mxu0 0.0
        %325 = vmatpush.msra.mxu0 0.0
        %326 = vmatpush.msra.mxu0 0.0
        %327 = vmatpush.msra.mxu0 0.0
        %328 = vmatpush.msra.mxu0 0.0
        %329 = vmatpush.msra.mxu0 0.0
        %330 = vmatpush.msra.mxu0 0.0
        %331 = vmatpush.msra.mxu0 0.0
        %332 = vmatpush.msra.mxu0 0.0
        %333 = vmatpush.msra.mxu0 0.0
        %334 = vmatpush.msra.mxu0 0.0
        %335 = vmatpush.msra.mxu0 0.0
        %336 = vmatpush.msra.mxu0 0.0
        %337 = vmatpush.msra.mxu0 %v300
        %338 = vmatmul.f32.gmra.mxu0 %v317
        %v339 = vpop.f32.mrf.mxu0
        %v340 = vadd.f32 %v313, %v339
        %341 = vmatmul.f32.gmra.mxu0 %v320
        %v342 = vpop.f32.mrf.mxu0
        %v343 = vadd.f32 %v313, %v342
        %344 = vdwg.mxu0
        %v345 = vmax.f32 %v340, 0.0
        %v346 = vmax.f32 %v343, 0.0
        %v348 = vperm.slane %v306, 0
        %vm350 = vcmask 261120
        %v352 = vsel %vm350, %v345, 0
        %v355 = vsel %vm350, %v346, 0
        %357 = vmatpush.msra.mxu0 0.0
        %358 = vmatpush.msra.mxu0 0.0
        %359 = vmatpush.msra.mxu0 0.0
        %360 = vmatpush.msra.mxu0 0.0
        %361 = vmatpush.msra.mxu0 0.0
        %362 = vmatpush.msra.mxu0 0.0
        %363 = vmatpush.msra.mxu0 0.0
        %364 = vmatpush.msra.mxu0 0.0
        %365 = vmatpush.msra.mxu0 0.0
        %366 = vmatpush.msra.mxu0 0.0
        %367 = vmatpush.msra.mxu0 0.0
        %368 = vmatpush.msra.mxu0 0.0
        %369 = vmatpush.msra.mxu0 %v305
        %370 = vmatpush.msra.mxu0 %v304
        %371 = vmatpush.msra.mxu0 %v303
        %372 = vmatpush.msra.mxu0 %v302
        %373 = vmatmul.f32.gmra.mxu0 %v352
        %v374 = vpop.f32.mrf.mxu0
        %v375 = vadd.f32 %v348, %v374
        %376 = vmatmul.f32.gmra.mxu0 %v355
        %v377 = vpop.f32.mrf.mxu0
        %v378 = vadd.f32 %v348, %v377
        %379 = vdwg.mxu0
        %v380 = vmax.f32 %v375, 0.0
        %v381 = vmax.f32 %v378, 0.0
        %v383 = vperm.slane %v309, 0
        %vm385 = vcmask 130048
        %v387 = vsel %vm385, %v380, 0
        %v390 = vsel %vm385, %v381, 0
        %392 = vmatpush.msra.mxu0 0.0
        %393 = vmatpush.msra.mxu0 0.0
        %394 = vmatpush.msra.mxu0 0.0
        %395 = vmatpush.msra.mxu0 0.0
        %396 = vmatpush.msra.mxu0 0.0
        %397 = vmatpush.msra.mxu0 0.0
        %398 = vmatpush.msra.mxu0 0.0
        %399 = vmatpush.msra.mxu0 0.0
        %400 = vmatpush.msra.mxu0 0.0
        %401 = vmatpush.msra.mxu0 0.0
        %402 = vmatpush.msra.mxu0 0.0
        %403 = vmatpush.msra.mxu0 0.0
        %404 = vmatpush.msra.mxu0 0.0
        %405 = vmatpush.msra.mxu0 0.0
        %406 = vmatpush.msra.mxu0 %v308
        %407 = vmatpush.msra.mxu0 %v307
        %408 = vmatmul.f32.gmra.mxu0 %v387
        %v409 = vpop.f32.mrf.mxu0
        %v410 = vadd.f32 %v383, %v409
        %411 = vmatmul.f32.gmra.mxu0 %v390
        %v412 = vpop.f32.mrf.mxu0
        %v413 = vadd.f32 %v383, %v412
        %414 = vdwg.mxu0
        %v415 = vmax.f32 %v410, 0.0
        %v416 = vmax.f32 %v413, 0.0
        %vm417 = vcmask 31744
        %v418 = vsel %vm417, %v415, -inf
        %419 = vmax.xlane.f32.xlu0 %v418
        %v420 = vpop.xlane.xlu0 %419
        %v421 = vsel %vm417, %v416, -inf
        %422 = vmax.xlane.f32.xlu0 %v421
        %v423 = vpop.xlane.xlu0 %422
        %v424 = vsub.f32 %v415, %v420
        %v425 = vsub.f32 %v416, %v423
        %v426 = vmul.f32 %v424, 1.442695
        %v427 = vpow.pop %v426
        %v428 = vmul.f32 %v425, 1.442695
        %v429 = vpow.pop %v428
        %v430 = vsel %vm417, %v427, 0.0
        %431 = vadd.xlane.f32.xlu0 %v430
        %v432 = vpop.xlane.xlu0 %431
        %v433 = vsel %vm417, %v429, 0.0
        %434 = vadd.xlane.f32.xlu0 %v433
        %v435 = vpop.xlane.xlu0 %434
        %v436 = vrcp.pop %v432
        %v437 = vmul.f32 %v432, %v436
        %v438 = vsub.f32 1.0, %v437
        %v439 = vmul.f32 %v436, %v438
        %v440 = vadd.f32 %v436, %v439
        %vm441 = vweird.f32 %v432
        %vm442 = vweird.f32 %v436
        %vm443 = vmor %vm441, %vm442
        %v444 = vsel %vm443, %v436, %v440
        %v445 = vand.u32 2147483647, %v432
        %vm446 = vcmp.eq.f32.partialorder %v445, 8.507059e+37
        %v447 = vand.u32 %v432, 2147483648
        %v448 = vor.u32 1.1754944e-38, %v447
        %v449 = vsel %vm446, %v448, %v444
        %v450 = vmul.f32 %v427, %v449
        %v451 = vrcp.pop %v435
        %v452 = vmul.f32 %v435, %v451
        %v453 = vsub.f32 1.0, %v452
        %v454 = vmul.f32 %v451, %v453
        %v455 = vadd.f32 %v451, %v454
        %vm456 = vweird.f32 %v435
        %vm457 = vweird.f32 %v451
        %vm458 = vmor %vm456, %vm457
        %v459 = vsel %vm458, %v451, %v455
        %v460 = vand.u32 2147483647, %v435
        %vm461 = vcmp.eq.f32.partialorder %v460, 8.507059e+37
        %v462 = vand.u32 %v435, 2147483648
        %v463 = vor.u32 1.1754944e-38, %v462
        %v464 = vsel %vm461, %v463, %v459
        %v465 = vmul.f32 %v429, %v464
        %466 = vst.msk [vmem:[%s280] sm:$0xff] %vm417, %v450
        %467 = vst.msk [vmem:[%s280 + $0x8] sm:$0xff] %vm417, %v465
        %s468 = sand.u32 %s178, 1
        %s469 = sand.u32 %s178, 1
        %s470 = smul.addr %s469, 16
        %s471 = scalar_lea.vmem [#allocation2], %s470
        // Predicated region
        $region49: #{tpu_custom_call.1} parent=47 // pred_check
          %p472 = pneg %p188
        $region50: #{tpu_custom_call.1} parent=47 // pred_check_branch
          %474 = sbr.rel (%p472) target = $region52
        $region51: #{tpu_custom_call.1} parent=47 // pred_region
          %s475 = smul.u32 2, %s18
          %s476 = ssub.s32 3, %s475
          %p477 = scmp.lt.s32.totalorder %s476, 2
          %s478 = scalar_select %p477, %s476, 2
          %s479 = smul.u32 8, %s478
          %p480 = scmp.ne.s32.totalorder 0, %s479
          %s481 = smul.addr %s475, 8
          %s482 = scalar_lea.vmem %s7, %s481
          // Predicated region
          $region53: #{tpu_custom_call.1} parent=51 // pred_check
            %p483 = pneg %p480
          $region54: #{tpu_custom_call.1} parent=51 // pred_check_branch
            %485 = sbr.rel (%p483) target = $region56
          $region55: #{tpu_custom_call.1} parent=51 // pred_region
            // Predicated region
            $region57: #{tpu_custom_call.1} parent=55 // pred_check
              _
            $region58: #{tpu_custom_call.1} parent=55 // pred_check_branch
              %487 = sbr.rel (0) target = $region60
            $region59: #{tpu_custom_call.1} parent=55 // pred_region
              // Predicated region
              $region79: #{tpu_custom_call.1} parent=59 // pred_check
                _
              $region80: #{tpu_custom_call.1} parent=59 // pred_check_branch
                %539 = sbr.rel (0) target = $region82
              $region81: #{tpu_custom_call.1} parent=59 // pred_region
                %s540 = sshrl.u32 %s478, 1
                // While loop
                $region83: #{tpu_custom_call.1} parent=81 // loop_pre_header
                  _
                $region84: #{tpu_custom_call.1} parent=81 // loop_header
                  %s542 = sphi 0, %s544
                  %p543 = scmp.ge.s32.totalorder %s542, %s540
                  %s547 = sphi 0, %s556
                  %s548 = sphi %s471, %s559
                  %s549 = sphi %s482, %s560
                $region85: #{tpu_custom_call.1} parent=81 // loop_header_branch
                  %546 = sbr.rel (%p543) target = $region89
                $region86: #{tpu_custom_call.1} parent=81 // loop_body
                  %v550 = vld [vmem:[%s548] sm:$0xff]
                  %551 = vst [vmem:[%s549] sm:$0xff] %v550
                  %v552 = vld [vmem:[%s548 + $0x8] sm:$0xff]
                  %553 = vst [vmem:[%s549 + $0x8] sm:$0xff] %v552
                  %s554 = sadd.s32 1, %s547
                  %p555 = scmp.ge.s32.totalorder %s554, %s540
                  %s556 = scalar_select %p555, 0, %s554
                  %s557 = smul.u32 %s556, 16
                  %s558 = smul.u32 %s556, 16
                  %s559 = scalar_lea.vmem %s471, %s557 [#allocation2]
                  %s560 = scalar_lea.vmem %s482, %s558
                $region87: #{tpu_custom_call.1} parent=81 // loop_footer
                  %s544 = sadd.s32 %s542, 1
                $region88: #{tpu_custom_call.1} parent=81 // loop_footer_branch
                  %541 = sbr.rel target = $region84
                $region89: #{tpu_custom_call.1} parent=81 // loop_exit
                  _
                %s561 = sshrl.u32 %s478, 1
                %s562 = sand.u32 %s478, 1
                %s563 = smul.u32 %s561, 2
                %s564 = smul.u32 8, %s563
                %s565 = scalar_lea.vmem %s471, %s564 [#allocation2]
                %s566 = smul.u32 8, %s563
                %s567 = scalar_lea.vmem %s482, %s566
                // While loop
                $region90: #{tpu_custom_call.1} parent=81 // loop_pre_header
                  _
                $region91: #{tpu_custom_call.1} parent=81 // loop_header
                  %s569 = sphi 0, %s571
                  %p570 = scmp.ge.s32.totalorder %s569, %s562
                  %s574 = sphi 0, %s581
                  %s575 = sphi %s565, %s584
                  %s576 = sphi %s567, %s585
                $region92: #{tpu_custom_call.1} parent=81 // loop_header_branch
                  %573 = sbr.rel (%p570) target = $region96
                $region93: #{tpu_custom_call.1} parent=81 // loop_body
                  %v577 = vld [vmem:[%s575] sm:$0xff]
                  %578 = vst [vmem:[%s576] sm:$0xff] %v577
                  %s579 = sadd.s32 1, %s574
                  %p580 = scmp.ge.s32.totalorder %s579, %s562
                  %s581 = scalar_select %p580, 0, %s579
                  %s582 = smul.u32 %s581, 8
                  %s583 = smul.u32 %s581, 8
                  %s584 = scalar_lea.vmem %s565, %s582 [#allocation2]
                  %s585 = scalar_lea.vmem %s567, %s583
                $region94: #{tpu_custom_call.1} parent=81 // loop_footer
                  %s571 = sadd.s32 %s569, 1
                $region95: #{tpu_custom_call.1} parent=81 // loop_footer_branch
                  %568 = sbr.rel target = $region91
                $region96: #{tpu_custom_call.1} parent=81 // loop_exit
                  _
              $region82: #{tpu_custom_call.1} parent=59 // pred_fallthru
                _
              // Predicated region
              $region97: #{tpu_custom_call.1} parent=59 // pred_check
                _
              $region98: #{tpu_custom_call.1} parent=59 // pred_check_branch
                %587 = sbr.rel target = $region100
              $region99: #{tpu_custom_call.1} parent=59 // pred_region
                _
              $region100: #{tpu_custom_call.1} parent=59 // pred_fallthru
                _
            $region60: #{tpu_custom_call.1} parent=55 // pred_fallthru
              _
            // Predicated region
            $region61: #{tpu_custom_call.1} parent=55 // pred_check
              _
            $region62: #{tpu_custom_call.1} parent=55 // pred_check_branch
              %489 = sbr.rel target = $region64
            $region63: #{tpu_custom_call.1} parent=55 // pred_region
              %s491 = ssub.s32 256, 1
              %s492 = sshrl.u32 %s478, 1
              // While loop
              $region65: #{tpu_custom_call.1} parent=63 // loop_pre_header
                _
              $region66: #{tpu_custom_call.1} parent=63 // loop_header
                %s494 = sphi 0, %s496
                %p495 = scmp.ge.s32.totalorder %s494, %s492
                %s499 = sphi 0, %s508
                %s500 = sphi %s471, %s511
                %s501 = sphi %s482, %s512
              $region67: #{tpu_custom_call.1} parent=63 // loop_header_branch
                %498 = sbr.rel (%p495) target = $region71
              $region68: #{tpu_custom_call.1} parent=63 // loop_body
                %v502 = vld [vmem:[%s500] sm:%s491]
                %503 = vst [vmem:[%s501] sm:%s491] %v502
                %v504 = vld [vmem:[%s500 + $0x8] sm:%s491]
                %505 = vst [vmem:[%s501 + $0x8] sm:%s491] %v504
                %s506 = sadd.s32 1, %s499
                %p507 = scmp.ge.s32.totalorder %s506, %s492
                %s508 = scalar_select %p507, 0, %s506
                %s509 = smul.u32 %s508, 16
                %s510 = smul.u32 %s508, 16
                %s511 = scalar_lea.vmem %s471, %s509 [#allocation2]
                %s512 = scalar_lea.vmem %s482, %s510
              $region69: #{tpu_custom_call.1} parent=63 // loop_footer
                %s496 = sadd.s32 %s494, 1
              $region70: #{tpu_custom_call.1} parent=63 // loop_footer_branch
                %493 = sbr.rel target = $region66
              $region71: #{tpu_custom_call.1} parent=63 // loop_exit
                _
              %s513 = sshrl.u32 %s478, 1
              %s514 = sand.u32 %s478, 1
              %s515 = smul.u32 %s513, 2
              %s516 = smul.u32 8, %s515
              %s517 = scalar_lea.vmem %s471, %s516 [#allocation2]
              %s518 = smul.u32 8, %s515
              %s519 = scalar_lea.vmem %s482, %s518
              // While loop
              $region72: #{tpu_custom_call.1} parent=63 // loop_pre_header
                _
              $region73: #{tpu_custom_call.1} parent=63 // loop_header
                %s521 = sphi 0, %s523
                %p522 = scmp.ge.s32.totalorder %s521, %s514
                %s526 = sphi 0, %s533
                %s527 = sphi %s517, %s536
                %s528 = sphi %s519, %s537
              $region74: #{tpu_custom_call.1} parent=63 // loop_header_branch
                %525 = sbr.rel (%p522) target = $region78
              $region75: #{tpu_custom_call.1} parent=63 // loop_body
                %v529 = vld [vmem:[%s527] sm:%s491]
                %530 = vst [vmem:[%s528] sm:%s491] %v529
                %s531 = sadd.s32 1, %s526
                %p532 = scmp.ge.s32.totalorder %s531, %s514
                %s533 = scalar_select %p532, 0, %s531
                %s534 = smul.u32 %s533, 8
                %s535 = smul.u32 %s533, 8
                %s536 = scalar_lea.vmem %s517, %s534 [#allocation2]
                %s537 = scalar_lea.vmem %s519, %s535
              $region76: #{tpu_custom_call.1} parent=63 // loop_footer
                %s523 = sadd.s32 %s521, 1
              $region77: #{tpu_custom_call.1} parent=63 // loop_footer_branch
                %520 = sbr.rel target = $region73
              $region78: #{tpu_custom_call.1} parent=63 // loop_exit
                _
            $region64: #{tpu_custom_call.1} parent=55 // pred_fallthru
              _
          $region56: #{tpu_custom_call.1} parent=51 // pred_fallthru
            _
          %588 = vnop
        $region52: #{tpu_custom_call.1} parent=47 // pred_fallthru
          _
      $region48: #{tpu_custom_call.1} parent=5 // pred_fallthru
        _
      %p589 = scmp.le.s32.totalorder 2, %s13
      // Predicated region
      $region101: #{tpu_custom_call.1} parent=5 // pred_check
        %p590 = pneg %p589
      $region102: #{tpu_custom_call.1} parent=5 // pred_check_branch
        %592 = sbr.rel (%p590) target = $region104
      $region103: #{tpu_custom_call.1} parent=5 // pred_region
        %s593 = ssub.s32 %s13, 2
        // Predicated region
        $region105: #{tpu_custom_call.1} parent=103 // pred_check
          %p594 = pneg %p194
        $region106: #{tpu_custom_call.1} parent=103 // pred_check_branch
          %596 = sbr.rel (%p594) target = $region108
        $region107: #{tpu_custom_call.1} parent=103 // pred_region
          %s597 = sand.u32 %s179, 1
          %s598 = sand.u32 %s179, 1
          %s599 = smul.addr %s598, 16
          %s600 = scalar_lea.vmem [#allocation2], %s599
        $region108: #{tpu_custom_call.1} parent=103 // pred_fallthru
          _
      $region104: #{tpu_custom_call.1} parent=5 // pred_fallthru
        _
    $region6: #{tpu_custom_call.1} parent=1 // loop_footer
      %s17 = sadd.s32 1, %s13
    $region7: #{tpu_custom_call.1} parent=1 // loop_footer_branch
      %12 = sbr.rel target = $region3
    $region8: #{tpu_custom_call.1} parent=1 // loop_exit
      _

</llo_original>
